<compile_context>
chip_gen: v5e
topology: v5e:2x2
jax: 0.10.0
libtpu: 0.0.40
codegen_flags: <defaults>
</compile_context>

<pallas_src>
import functools

import jax
import jax.numpy as jnp
from jax.experimental import pallas as pl
from jax.experimental.pallas import tpu as pltpu


def _gate_kernel(x_ref, z_ref, o_ref, *, tf, resident_gate):
    # gated_x = x * z   (gate row broadcast across the batch tile)
    if resident_gate:
        # Gate is fully resident in VMEM; slice the columns for this tile.
        start = pl.multiple_of(pl.program_id(1) * tf, 128)
        z = z_ref[:, pl.ds(start, tf)]
    else:
        z = z_ref[...]
    o_ref[...] = x_ref[...] * z


def _round_up(n, m):
    return ((n + m - 1) // m) * m


def _vmem_capacity_bytes():
    try:
        return int(pltpu.get_tpu_info().vmem_capacity_bytes)
    except Exception:
        return 64 << 20          # conservative fallback (v7x-sized)


@functools.partial(
    jax.jit, static_argnames=("sigma", "training", "tb", "tf", "donate_x"))
def stochastic_gates_forward(x, mus, key, *, sigma, training,
                             tb=1024, tf=2048, donate_x=False):
    """Pallas implementation of StochasticGates.forward.

    x:    [B, F]  input (batch, features)
    mus:  [F]     learnable gate means
    key:  PRNG key used only when training=True (replaces torch.randn)
    tb:   batch tile (tunable; swept per chip)
    tf:   feature tile (multiple of 128)
    donate_x: alias the output onto x's HBM buffer (caller must donate x)
    """
    B, F = x.shape
    db = jnp.dtype(x.dtype).itemsize
    sublane = {4: 8, 2: 16, 1: 32}.get(db, 8)

    # --- gate: parameter-sized, computed once in the wrapper (f32 -> cast) --
    if training:
        noise = sigma * jax.random.normal(key, mus.shape, dtype=jnp.float32)
        shifted = mus.astype(jnp.float32) + noise
    else:
        shifted = mus.astype(jnp.float32)        # skip RNG entirely in eval
    z = jnp.clip(shifted, 0.0, 1.0).astype(x.dtype)

    # --- tile selection (no padding of x; ragged edges handled by Pallas) ---
    tf_eff = min(_round_up(tf, 128), _round_up(F, 128))
    tb_eff = min(_round_up(tb, sublane), _round_up(B, sublane))

    vmem_cap = _vmem_capacity_bytes()            # 64 MiB v7x, 128 MiB v5e/v6e
    vmem_budget = int(vmem_cap * 0.75)           # leave compiler-scratch headroom
    headroom = 2 << 20

    def _footprint(tb_, tf_):
        f_z = _round_up(F, tf_)
        # 2 double-buffered tiles (in + out) + resident gate (counted 2x).
        return 4 * tb_ * tf_ * db + 2 * f_z * db + headroom

    while tb_eff > sublane and _footprint(tb_eff, tf_eff) > vmem_budget:
        tb_eff = max(sublane, _round_up(tb_eff // 2, sublane))

    # Megacore (v7x: 2 TCs). Avoid a degenerate (1, 1) grid on parallel axes.
    if pl.cdiv(B, tb_eff) == 1 and pl.cdiv(F, tf_eff) == 1:
        if B > sublane:
            tb_eff = _round_up(pl.cdiv(B, 2), sublane)
        elif F > 128:
            tf_eff = _round_up(pl.cdiv(F, 2), 128)

    grid_b = pl.cdiv(B, tb_eff)
    grid_f = pl.cdiv(F, tf_eff)
    F_z = grid_f * tf_eff                        # gate padded to tile multiple

    # --- gate buffer: pad the (cheap, parameter-sized) row, keep resident ---
    z2 = z.reshape(1, F)
    if F_z != F:
        z2 = jnp.pad(z2, ((0, 0), (0, F_z - F)))
    resident_gate = (2 * F_z * db) <= min(4 << 20, max(vmem_budget // 8, 1))

    if resident_gate:
        z_spec = pl.BlockSpec((1, F_z), lambda i, j: (0, 0))     # DMA'd once
    else:
        z_spec = pl.BlockSpec((1, tf_eff), lambda i, j: (0, j))  # per-column tile

    vmem_needed = _footprint(tb_eff, tf_eff)
    vmem_limit = min(max(vmem_needed, 16 << 20), vmem_budget)

    kernel = functools.partial(_gate_kernel, tf=tf_eff,
                               resident_gate=resident_gate)

    out = pl.pallas_call(
        kernel,
        out_shape=jax.ShapeDtypeStruct((B, F), x.dtype),
        grid_spec=pltpu.PrefetchScalarGridSpec(
            num_scalar_prefetch=0,
            grid=(grid_b, grid_f),
            in_specs=[
                pl.BlockSpec((tb_eff, tf_eff), lambda i, j: (i, j)),  # x tile
                z_spec,                                               # gate row
            ],
            out_specs=pl.BlockSpec((tb_eff, tf_eff), lambda i, j: (i, j)),
        ),
        compiler_params=pltpu.CompilerParams(
            dimension_semantics=("parallel", "parallel"),
            vmem_limit_bytes=vmem_limit,
        ),
        input_output_aliases=({0: 0} if donate_x else {}),
    )(x, z2)
    return out


if __name__ == "__main__":
    key = jax.random.PRNGKey(0)
    k_x, k_noise = jax.random.split(key)

    B, F = 8, 128          # small demo shapes: batch, gate size
    sigma = 0.5
    training = True

    x = jax.random.normal(k_x, (B, F), dtype=jnp.float32)
    # Deterministic parameter init (matches gate_init=None -> 0.5 * ones(size)).
    mus = 0.5 * jnp.ones((F,), dtype=jnp.float32)

    out = stochastic_gates_forward(x, mus, k_noise,
                                   sigma=sigma, training=training)
    out = jax.block_until_ready(out)

    # Pure-JAX reference check (same noise draw, same gate precision).
    noise_ref = sigma * jax.random.normal(k_noise, mus.shape,
                                          dtype=jnp.float32)
    z_ref = jnp.clip(mus + noise_ref, 0.0, 1.0)
    ref = x * z_ref[None, :]
    assert jnp.allclose(out, ref, atol=1e-6), "mismatch vs reference"

    # Eval-mode check (noise must be zero; RNG skipped in wrapper).
    out_eval = jax.block_until_ready(
        stochastic_gates_forward(x, mus, k_noise,
                                 sigma=sigma, training=False))
    ref_eval = x * jnp.clip(mus, 0.0, 1.0)[None, :]
    assert jnp.allclose(out_eval, ref_eval, atol=1e-6), "eval mismatch"

    # Ragged-shape check (non-multiple of (8, 128)) to exercise the cdiv grid.
    B2, F2 = 13, 200
    x2 = jax.random.normal(k_x, (B2, F2), dtype=jnp.float32)
    mus2 = 0.5 * jnp.ones((F2,), dtype=jnp.float32)
    out2 = jax.block_until_ready(
        stochastic_gates_forward(x2, mus2, k_noise,
                                 sigma=sigma, training=True))
    noise2 = sigma * jax.random.normal(k_noise, mus2.shape, dtype=jnp.float32)
    ref2 = x2 * jnp.clip(mus2 + noise2, 0.0, 1.0)[None, :]
    assert jnp.allclose(out2, ref2, atol=1e-6), "ragged-shape mismatch"

    print("KERNEL_OK")
</pallas_src>

<mosaic_0001>
module attributes {stable_mosaic.version = 11 : i64} {
  func.func @_gate_kernel(%arg0: i32, %arg1: i32, %arg2: memref<8x128xf32, #tpu.memory_space<vmem>>, %arg3: memref<1x128xf32, #tpu.memory_space<vmem>>, %arg4: memref<8x128xf32, #tpu.memory_space<vmem>>) attributes {dimension_semantics = [#tpu.dimension_semantics<parallel>, #tpu.dimension_semantics<parallel>], iteration_bounds = array<i64: 1, 1>, scalar_prefetch = 0 : i64, scratch_operands = 0 : i64, tpu.core_type = #tpu.core_type<tc>, window_params = [{transform_indices = @transform_0, window_bounds = array<i64: 8, 128>}, {pipeline_mode = #tpu.pipeline_mode<synchronous>, transform_indices = @transform_1, window_bounds = array<i64: 1, 128>}, {transform_indices = @transform_2, window_bounds = array<i64: 8, 128>}]} {
    %c128_i32 = arith.constant 128 : i32
    %0 = arith.muli %arg1, %c128_i32 : i32
    %1 = tpu.assume_multiple %0, 128 : i32
    %c0 = arith.constant 0 : index
    %2 = arith.index_cast %1 : i32 to index
    %3 = vector.load %arg3[%c0, %2] : memref<1x128xf32, #tpu.memory_space<vmem>>, vector<1x128xf32>
    %c0_0 = arith.constant 0 : index
    %c0_1 = arith.constant 0 : index
    %4 = vector.load %arg2[%c0_0, %c0_1] : memref<8x128xf32, #tpu.memory_space<vmem>>, vector<8x128xf32>
    %5 = vector.broadcast %3 : vector<1x128xf32> to vector<8x128xf32>
    %6 = arith.mulf %4, %5 : vector<8x128xf32>
    %c0_2 = arith.constant 0 : index
    %c0_3 = arith.constant 0 : index
    %7 = vector.load %arg4[%c0_2, %c0_3] : memref<8x128xf32, #tpu.memory_space<vmem>>, vector<8x128xf32>
    tpu.vector_store %arg4[%c0_2, %c0_3], %6 {strides = array<i32>} : memref<8x128xf32, #tpu.memory_space<vmem>>, vector<8x128xf32>,
    return
  }
  func.func @transform_0(%arg0: i32, %arg1: i32) -> (i32, i32) {
    %c0_i32 = arith.constant 0 : i32
    return %arg0, %arg1 : i32, i32
  }
  func.func @transform_1(%arg0: i32, %arg1: i32) -> (i32, i32) {
    %c0_i32 = arith.constant 0 : i32
    %c0_i32_0 = arith.constant 0 : i32
    %c0_i32_1 = arith.constant 0 : i32
    return %c0_i32, %c0_i32_0 : i32, i32
  }
  func.func @transform_2(%arg0: i32, %arg1: i32) -> (i32, i32) {
    %c0_i32 = arith.constant 0 : i32
    return %arg0, %arg1 : i32, i32
  }
}

</mosaic_0001>

<llo_original>
// kernel: stochastic_gates_forward.1
$region0: #{stochastic_gates_forward.1}
  #allocation0 [shape = 'u32[]', space=smem, size = 0x4, offset = 0x4, fixed_abs, tag = 'smem constant byte address 0x4 - core index']
  #allocation1 [shape = 'u32[72,128]{1,0:T(1,128)}', space=vmem, size = 0x9000, scoped, tag = 'internal scratch']
  %s0 = inlined_call_operand.vmem [shape: f32[8,128], index: 0, kind: input, shape index: {}]
  %s1 = inlined_call_operand.vmem [shape: f32[1,128], index: 1, kind: input, shape index: {}]
  %s2 = inlined_call_operand.hbm [shape: f32[8,128], index: 2, kind: output, shape index: {}]
  %s3 = sld [smem:[#allocation0]]
  $region18: #{stochastic_gates_forward.1} parent=0
    _
  %s5 = ssub.s32 1, %s3
  %s6 = scalar_select 0, %s5, %s3
  $region1: #{stochastic_gates_forward.1} parent=0
    #allocation2 [shape = 'u8[4096]{0}', space=vmem, size = 0x1000, scoped, tag = 'output window, operand 0, single buffered']
    #allocation3 [shape = 's32[1]{0}', space=sflag, size = 0x4, scoped, tag = 'scoped memory for stochastic_gates_forward.1']
    %7 = vsyncpa [#allocation3], 0
    // Predicated region
    $region2: #{stochastic_gates_forward.1} parent=1 // pred_check
      _
    $region3: #{stochastic_gates_forward.1} parent=1 // pred_check_branch
      %9 = sbr.rel (0) target = $region5
    $region4: #{stochastic_gates_forward.1} parent=1 // pred_region
      _
    $region5: #{stochastic_gates_forward.1} parent=1 // pred_fallthru
      _
    // Predicated region
    $region6: #{stochastic_gates_forward.1} parent=1 // pred_check
      _
    $region7: #{stochastic_gates_forward.1} parent=1 // pred_check_branch
      %11 = sbr.rel (0) target = $region9
    $region8: #{stochastic_gates_forward.1} parent=1 // pred_region
      _
    $region9: #{stochastic_gates_forward.1} parent=1 // pred_fallthru
      _
    %s12 = smul.u32 0, 128
    %s13 = sshra.s32 %s12, 7
    %s14 = sand.u32 %s12, 127
    %s15 = scalar_lea.vmem %s1, %s13
    %v16 = vld [vmem:[%s15] sm:$0x1]
    %v17 = vld [vmem:[%s0] sm:$0xff]
    %v19 = vperm.slane %v16, 0
    %v21 = vmul.f32 %v17, %v19
    %22 = vst [vmem:[#allocation2] sm:$0xff] %v21
    // Predicated region
    $region10: #{stochastic_gates_forward.1} parent=1 // pred_check
      _
    $region11: #{stochastic_gates_forward.1} parent=1 // pred_check_branch
      %24 = sbr.rel (0) target = $region13
    $region12: #{stochastic_gates_forward.1} parent=1 // pred_region
      %26 = vsyncadd [#allocation3], 0
      %s28 = sshll.u32 [#allocation2], 4
      %s29 = int_to_ptr.vmem [resolvable:$true] %s28
      %s30 = sshll.u32 %s2, 4
      %s31 = int_to_ptr.hbm [resolvable:$true] %s30
      %33 = dma.vmem_to_hbm [thread:$0]  %s29, 128, %s31, [#allocation3]
    $region13: #{stochastic_gates_forward.1} parent=1 // pred_fallthru
      _
    // Predicated region
    $region14: #{stochastic_gates_forward.1} parent=1 // pred_check
      _
    $region15: #{stochastic_gates_forward.1} parent=1 // pred_check_branch
      %35 = sbr.rel (0) target = $region17
    $region16: #{stochastic_gates_forward.1} parent=1 // pred_region
      %37 = dma.done [#allocation3], 128
    $region17: #{stochastic_gates_forward.1} parent=1 // pred_fallthru
      _
    %38 = vsyncpa [#allocation3], 1

</llo_original>
